<compile_context>
chip_gen: v6e
topology: v6e:2x2x1
jax: 0.10.0
libtpu: 0.0.40
codegen_flags: <defaults>
</compile_context>

<pallas_src>
import jax
import jax.numpy as jnp
from jax.experimental import pallas as pl
from jax.experimental.pallas import tpu as pltpu

_LANE = 128
_MAX_ROW_TILE = 2048          # 2048 x 128 x 4B = 1 MiB per f32 block
_SMALL_RAGGED_BYTES = 1 << 20  # single-block path cap for non-128-aligned sizes


def _copy_kernel(x_ref, o_ref):
    o_ref[...] = x_ref[...]


def _squeezed_shape(shape):
    s = tuple(int(d) for d in shape if d != 1)
    if len(s) == 1:            # torch: if x.dim() == 1: x = x.unsqueeze(0)
        s = (1,) + s
    return s


def _sublane_multiple(dtype):
    # packed sublane tile: 8 for 4-byte, 16 for 2-byte, 32 for 1-byte dtypes
    return {4: 8, 2: 16, 1: 32}.get(jnp.dtype(dtype).itemsize, 8)


def _round_up(a, b):
    return (a + b - 1) // b * b


def _tiled_copy(x2d, rows, dtype, cost, aliases):
    sub = _sublane_multiple(dtype)
    tr = min(_MAX_ROW_TILE, _round_up(rows, sub))
    return pl.pallas_call(
        _copy_kernel,
        out_shape=jax.ShapeDtypeStruct((rows, _LANE), dtype),
        grid=(pl.cdiv(rows, tr),),                       # ragged last block is masked
        in_specs=[pl.BlockSpec((tr, _LANE), lambda i: (i, 0))],
        out_specs=pl.BlockSpec((tr, _LANE), lambda i: (i, 0)),
        input_output_aliases=aliases,
        cost_estimate=cost,
        compiler_params=pltpu.CompilerParams(
            dimension_semantics=("parallel",),
            vmem_limit_bytes=32 << 20,
        ),
    )(x2d)


def pallas_squeeze(x, donate=False):
    out_shape = _squeezed_shape(x.shape)
    n = x.size
    if n == 0:
        return jnp.reshape(x, out_shape)

    itemsize = jnp.dtype(x.dtype).itemsize
    cost = pl.CostEstimate(flops=0, transcendentals=0,
                           bytes_accessed=2 * n * itemsize)
    aliases = {0: 0} if donate else {}

    if n % _LANE == 0:
        # Main path: lane-dense (rows, 128) view, no pad, no slice.
        rows = n // _LANE
        x2d = jnp.reshape(x, (rows, _LANE))
        out2d = _tiled_copy(x2d, rows, x.dtype, cost, aliases)
        return jnp.reshape(out2d, out_shape)

    if n * itemsize <= _SMALL_RAGGED_BYTES:
        # Tiny ragged tensors: single whole-array block, still no pad/slice.
        x2d = jnp.reshape(x, (1, n))
        out2d = pl.pallas_call(
            _copy_kernel,
            out_shape=jax.ShapeDtypeStruct((1, n), x.dtype),
            input_output_aliases=aliases,
            cost_estimate=cost,
        )(x2d)
        return jnp.reshape(out2d, out_shape)

    # Large ragged tensors (rare): pad the <128-element tail, tiled copy, slice.
    # TODO(synk): replace the pad/slice with an in-kernel masked tail store.
    rows = pl.cdiv(n, _LANE)
    flat = jnp.pad(jnp.reshape(x, (-1,)), (0, rows * _LANE - n))
    out2d = _tiled_copy(jnp.reshape(flat, (rows, _LANE)), rows, x.dtype, cost, {})
    return jnp.reshape(jnp.reshape(out2d, (-1,))[:n], out_shape)


if __name__ == "__main__":
    key = jax.random.PRNGKey(0)
    k1, k2, k3 = jax.random.split(key, 3)
    fwd = jax.jit(pallas_squeeze)

    # Main case: (2, 1, 16, 16) --squeeze--> (2, 16, 16)   (n=512, lane-aligned)
    x = jax.random.normal(k1, (2, 1, 16, 16), jnp.float32)
    y = jax.block_until_ready(fwd(x))
    assert y.shape == (2, 16, 16), y.shape
    assert bool(jnp.array_equal(y, jnp.squeeze(x)))

    # dim()==1 branch: (1, 32, 1, 1) --squeeze--> (32,) --unsqueeze(0)--> (1, 32)
    x2 = jax.random.normal(k2, (1, 32, 1, 1), jnp.float32)
    y2 = jax.block_until_ready(fwd(x2))
    assert y2.shape == (1, 32), y2.shape
    assert bool(jnp.array_equal(y2, jnp.squeeze(x2)[None, :]))

    # bf16 case exercising the packed-sublane tile rounding: (4, 1, 8, 32)
    x3 = jax.random.normal(k3, (4, 1, 8, 32), jnp.float32).astype(jnp.bfloat16)
    y3 = jax.block_until_ready(fwd(x3))
    assert y3.shape == (4, 8, 32), y3.shape
    assert bool(jnp.array_equal(y3, jnp.squeeze(x3)))

    print("KERNEL_OK")
</pallas_src>

<mosaic_0001>
module attributes {stable_mosaic.version = 11 : i64} {
  func.func @_copy_kernel(%arg0: i32, %arg1: memref<8x128xf32, #tpu.memory_space<vmem>>, %arg2: memref<8x128xf32, #tpu.memory_space<vmem>>) attributes {dimension_semantics = [#tpu.dimension_semantics<parallel>], iteration_bounds = array<i64: 1>, scalar_prefetch = 0 : i64, scratch_operands = 0 : i64, tpu.core_type = #tpu.core_type<tc>, window_params = [{transform_indices = @transform_0, window_bounds = array<i64: 8, 128>}, {transform_indices = @transform_1, window_bounds = array<i64: 8, 128>}]} {
    %c0 = arith.constant 0 : index
    %c0_0 = arith.constant 0 : index
    %0 = vector.load %arg1[%c0, %c0_0] : memref<8x128xf32, #tpu.memory_space<vmem>>, vector<8x128xf32>
    %c0_1 = arith.constant 0 : index
    %c0_2 = arith.constant 0 : index
    %1 = vector.load %arg2[%c0_1, %c0_2] : memref<8x128xf32, #tpu.memory_space<vmem>>, vector<8x128xf32>
    tpu.vector_store %arg2[%c0_1, %c0_2], %0 {strides = array<i32>} : memref<8x128xf32, #tpu.memory_space<vmem>>, vector<8x128xf32>,
    return
  }
  func.func @transform_0(%arg0: i32) -> (i32, i32) {
    %c0_i32 = arith.constant 0 : i32
    %c0_i32_0 = arith.constant 0 : i32
    return %arg0, %c0_i32 : i32, i32
  }
  func.func @transform_1(%arg0: i32) -> (i32, i32) {
    %c0_i32 = arith.constant 0 : i32
    %c0_i32_0 = arith.constant 0 : i32
    return %arg0, %c0_i32 : i32, i32
  }
}

</mosaic_0001>

<llo_original>
// kernel: pallas_squeeze.1
$region0: #{pallas_squeeze.1}
  #allocation0 [shape = 'u32[]', space=smem, size = 0x4, offset = 0x4, fixed_abs, tag = 'smem constant byte address 0x4 - core index']
  #allocation1 [shape = 'u32[144,128]{1,0:T(1,128)}', space=vmem, size = 0x12000, scoped, tag = 'internal scratch']
  %s0 = inlined_call_operand.vmem [shape: f32[4,128], index: 0, kind: input, shape index: {}]
  %s1 = inlined_call_operand.vmem [shape: f32[4,128], index: 1, kind: output, shape index: {}]
  %s2 = sld [smem:[#allocation0]]
  $region44: #{pallas_squeeze.1} parent=0
    _
  %s4 = ssub.s32 1, %s2
  %s5 = scalar_select 0, %s4, %s2
  $region1: #{pallas_squeeze.1} parent=0
    #allocation2 [shape = 'u8[4096]{0}', space=vmem, size = 0x1000, scoped, tag = 'output window, operand 0, single buffered']
    // Predicated region
    $region2: #{pallas_squeeze.1} parent=1 // pred_check
      _
    $region3: #{pallas_squeeze.1} parent=1 // pred_check_branch
      %7 = sbr.rel (0) target = $region5
    $region4: #{pallas_squeeze.1} parent=1 // pred_region
      _
    $region5: #{pallas_squeeze.1} parent=1 // pred_fallthru
      _
    %v8 = vld [vmem:[%s0] sm:$0xff]
    %9 = vst [vmem:[#allocation2] sm:$0xff] %v8
    // Predicated region
    $region6: #{pallas_squeeze.1} parent=1 // pred_check
      _
    $region7: #{pallas_squeeze.1} parent=1 // pred_check_branch
      %11 = sbr.rel (0) target = $region9
    $region8: #{pallas_squeeze.1} parent=1 // pred_region
      // Predicated region
      $region10: #{pallas_squeeze.1} parent=8 // pred_check
        _
      $region11: #{pallas_squeeze.1} parent=8 // pred_check_branch
        %13 = sbr.rel (0) target = $region13
      $region12: #{pallas_squeeze.1} parent=8 // pred_region
        // Predicated region
        $region14: #{pallas_squeeze.1} parent=12 // pred_check
          _
        $region15: #{pallas_squeeze.1} parent=12 // pred_check_branch
          %15 = sbr.rel target = $region17
        $region16: #{pallas_squeeze.1} parent=12 // pred_region
          // Predicated region
          $region29: #{pallas_squeeze.1} parent=16 // pred_check
            _
          $region30: #{pallas_squeeze.1} parent=16 // pred_check_branch
            %31 = sbr.rel (0) target = $region32
          $region31: #{pallas_squeeze.1} parent=16 // pred_region
            %s33 = ssub.s32 16, 1
            loop: start=0, step=1, limit=1
            $region33: #{pallas_squeeze.1} parent=31 // loop_pre_header
              _
            $region34: #{pallas_squeeze.1} parent=31 // loop_header
              %s35 = sphi 0, %s39
              %p36 = scmp.ge.s32.totalorder %s35, 1
              %s40 = sphi [#allocation2], [#allocation2]
              %s41 = sphi %s1, %s1
            $region35: #{pallas_squeeze.1} parent=31 // loop_header_branch
              %38 = sbr.rel (%p36) target = $region39
            $region36: #{pallas_squeeze.1} parent=31 // loop_body
              %v42 = vld [vmem:[%s40] sm:%s33]
              %43 = vst [vmem:[%s41] sm:%s33] %v42
            $region37: #{pallas_squeeze.1} parent=31 // loop_footer
              %s39 = sadd.s32 1, %s35
            $region38: #{pallas_squeeze.1} parent=31 // loop_footer_branch
              %34 = sbr.rel target = $region34
            $region39: #{pallas_squeeze.1} parent=31 // loop_exit
              _
          $region32: #{pallas_squeeze.1} parent=16 // pred_fallthru
            _
        $region17: #{pallas_squeeze.1} parent=12 // pred_fallthru
          _
        // Predicated region
        $region18: #{pallas_squeeze.1} parent=12 // pred_check
          _
        $region19: #{pallas_squeeze.1} parent=12 // pred_check_branch
          %17 = sbr.rel (0) target = $region21
        $region20: #{pallas_squeeze.1} parent=12 // pred_region
          %s19 = ssub.s32 16, 1
          loop: start=0, step=1, limit=1
          $region22: #{pallas_squeeze.1} parent=20 // loop_pre_header
            _
          $region23: #{pallas_squeeze.1} parent=20 // loop_header
            %s21 = sphi 0, %s25
            %p22 = scmp.ge.s32.totalorder %s21, 1
            %s26 = sphi [#allocation2], [#allocation2]
            %s27 = sphi %s1, %s1
          $region24: #{pallas_squeeze.1} parent=20 // loop_header_branch
            %24 = sbr.rel (%p22) target = $region28
          $region25: #{pallas_squeeze.1} parent=20 // loop_body
            %v28 = vld [vmem:[%s26] sm:%s19]
            %29 = vst [vmem:[%s27] sm:%s19] %v28
          $region26: #{pallas_squeeze.1} parent=20 // loop_footer
            %s25 = sadd.s32 1, %s21
          $region27: #{pallas_squeeze.1} parent=20 // loop_footer_branch
            %20 = sbr.rel target = $region23
          $region28: #{pallas_squeeze.1} parent=20 // loop_exit
            _
        $region21: #{pallas_squeeze.1} parent=12 // pred_fallthru
          _
      $region13: #{pallas_squeeze.1} parent=8 // pred_fallthru
        _
      %44 = vnop
    $region9: #{pallas_squeeze.1} parent=1 // pred_fallthru
      _
    // Predicated region
    $region40: #{pallas_squeeze.1} parent=1 // pred_check
      _
    $region41: #{pallas_squeeze.1} parent=1 // pred_check_branch
      %46 = sbr.rel (0) target = $region43
    $region42: #{pallas_squeeze.1} parent=1 // pred_region
      _
    $region43: #{pallas_squeeze.1} parent=1 // pred_fallthru
      _

</llo_original>
